<compile_context>
chip_gen: v7x
topology: tpu7x:2x2x1
jax: 0.10.0
libtpu: 0.0.40
codegen_flags: <defaults>
</compile_context>

<pallas_src>
import math

import jax
import jax.numpy as jnp
from jax.experimental import pallas as pl
from jax.experimental.pallas import tpu as pltpu


def _build_pe(max_len: int, d_model: int) -> jnp.ndarray:
    """Deterministic sinusoidal positional-encoding buffer, shape (max_len, d_model)."""
    position = jnp.arange(0, max_len, dtype=jnp.float32)[:, None]             # (L, 1)
    div_term = jnp.exp(
        jnp.arange(0, d_model, 2, dtype=jnp.float32) * -(math.log(10000.0) / d_model)
    )                                                                          # (D/2,)
    angles = position * div_term                                               # (L, D/2)
    pe = jnp.zeros((max_len, d_model), dtype=jnp.float32)
    pe = pe.at[:, 0::2].set(jnp.sin(angles))
    pe = pe.at[:, 1::2].set(jnp.cos(angles))
    return pe


def _pos_enc_kernel(x_ref, pe_ref, o_ref):
    # x_ref/o_ref: (tB, tF); pe_ref: (1, tF) -> cheap sublane broadcast, no
    # rank-3 broadcast_in_dim in the loop body.
    o_ref[...] = (x_ref[...] + pe_ref[...]).astype(o_ref.dtype)


# ---- tile selection helpers (trace-time Python on static shapes) ----------

_TARGET_BLOCK_BYTES = 2 << 20  # ~2 MiB per block -> ~85%+ of HBM roofline,
                               # and ~<=12 MiB total with double-buffering.


def _pick_fused_tile(fused: int, itemsize: int) -> int:
    """Largest multiple-of-128 divisor of `fused` under the byte budget,
    or the full fused axis (full-dim exemption) when it can't be tiled."""
    if fused % 128 != 0 or fused * itemsize <= _TARGET_BLOCK_BYTES:
        return fused
    max_lanes = max(128, (_TARGET_BLOCK_BYTES // itemsize) // 128 * 128)
    for cand in range(max_lanes, 127, -128):
        if fused % cand == 0:
            return cand
    return 128


def _pick_batch_tile(batch: int, t_fused: int, itemsize: int) -> int:
    """Batch rows per block: full batch if it fits the budget, else the largest
    multiple-of-8 divisor that fits (keeps the (8,128) constraint legal)."""
    if batch * t_fused * itemsize <= _TARGET_BLOCK_BYTES:
        return batch
    rows_budget = max(1, _TARGET_BLOCK_BYTES // (t_fused * itemsize))
    for cand in range(rows_budget - rows_budget % 8, 7, -8):
        if batch % cand == 0:
            return cand
    return 8 if batch % 8 == 0 else batch


def positional_encoding(x: jnp.ndarray, pe_full: jnp.ndarray) -> jnp.ndarray:
    """x: (B, S, D); pe_full: (max_len, D). Returns x + pe[:S] (eval-mode dropout)."""
    B, S, D = x.shape
    fused = S * D
    itemsize = x.dtype.itemsize

    # pe buffer: slice to S, cast once to x.dtype, flatten to lane-dense (1, S*D).
    pe2 = pe_full[:S, :].astype(x.dtype).reshape(1, fused)
    x2 = x.reshape(B, fused)

    t_fused = _pick_fused_tile(fused, itemsize)
    t_batch = _pick_batch_tile(B, t_fused, itemsize)

    # Grid: fused-axis tiles outer (slow), batch tiles inner (fast) so the pe
    # block index is constant across consecutive steps -> pe stays VMEM-resident.
    grid = (fused // t_fused, B // t_batch)

    out2 = pl.pallas_call(
        _pos_enc_kernel,
        out_shape=jax.ShapeDtypeStruct((B, fused), x.dtype),
        grid_spec=pl.GridSpec(
            grid=grid,
            in_specs=[
                pl.BlockSpec((t_batch, t_fused), lambda f, b: (b, f)),  # x
                pl.BlockSpec((1, t_fused), lambda f, b: (0, f)),        # pe (batch-invariant)
            ],
            out_specs=pl.BlockSpec((t_batch, t_fused), lambda f, b: (b, f)),
        ),
        compiler_params=pltpu.CompilerParams(
            dimension_semantics=("parallel", "parallel"),
        ),
        input_output_aliases={0: 0},  # donate x buffer to the output
    )(x2, pe2)

    return out2.reshape(B, S, D)


if __name__ == "__main__":
    B, S, D = 2, 8, 32
    max_len = 5038
    dropout_p = 0.1  # unused: eval-mode forward (dropout = identity)

    key = jax.random.PRNGKey(0)
    x = jax.random.normal(key, (B, S, D), dtype=jnp.float32)

    pe_full = _build_pe(max_len, D)

    pos_enc = jax.jit(positional_encoding)
    out = jax.block_until_ready(pos_enc(x, pe_full))

    # sanity check against plain-JAX reference
    ref = x + pe_full[None, :S, :]
    assert out.shape == (B, S, D)
    assert jnp.allclose(out, ref, atol=1e-6, rtol=1e-6), "mismatch vs reference"

    print("KERNEL_OK")
</pallas_src>

<mosaic_0001>
module attributes {stable_mosaic.version = 11 : i64} {
  func.func @_pos_enc_kernel(%arg0: i32, %arg1: i32, %arg2: memref<2x256xf32, #tpu.memory_space<vmem>>, %arg3: memref<1x256xf32, #tpu.memory_space<vmem>>, %arg4: memref<2x256xf32, #tpu.memory_space<vmem>>) attributes {dimension_semantics = [#tpu.dimension_semantics<parallel>, #tpu.dimension_semantics<parallel>], iteration_bounds = array<i64: 1, 1>, scalar_prefetch = 0 : i64, scratch_operands = 0 : i64, tpu.core_type = #tpu.core_type<tc>, window_params = [{transform_indices = @transform_0, window_bounds = array<i64: 2, 256>}, {transform_indices = @transform_1, window_bounds = array<i64: 1, 256>}, {transform_indices = @transform_2, window_bounds = array<i64: 2, 256>}]} {
    %c0 = arith.constant 0 : index
    %c0_0 = arith.constant 0 : index
    %0 = vector.load %arg2[%c0, %c0_0] : memref<2x256xf32, #tpu.memory_space<vmem>>, vector<2x256xf32>
    %c0_1 = arith.constant 0 : index
    %c0_2 = arith.constant 0 : index
    %1 = vector.load %arg3[%c0_1, %c0_2] : memref<1x256xf32, #tpu.memory_space<vmem>>, vector<1x256xf32>
    %2 = vector.broadcast %1 : vector<1x256xf32> to vector<2x256xf32>
    %3 = arith.addf %0, %2 : vector<2x256xf32>
    %c0_3 = arith.constant 0 : index
    %c0_4 = arith.constant 0 : index
    %4 = vector.load %arg4[%c0_3, %c0_4] : memref<2x256xf32, #tpu.memory_space<vmem>>, vector<2x256xf32>
    tpu.vector_store %arg4[%c0_3, %c0_4], %3 {strides = array<i32>} : memref<2x256xf32, #tpu.memory_space<vmem>>, vector<2x256xf32>,
    return
  }
  func.func @transform_0(%arg0: i32, %arg1: i32) -> (i32, i32) {
    %c0_i32 = arith.constant 0 : i32
    return %arg1, %arg0 : i32, i32
  }
  func.func @transform_1(%arg0: i32, %arg1: i32) -> (i32, i32) {
    %c0_i32 = arith.constant 0 : i32
    %c0_i32_0 = arith.constant 0 : i32
    return %c0_i32, %arg0 : i32, i32
  }
  func.func @transform_2(%arg0: i32, %arg1: i32) -> (i32, i32) {
    %c0_i32 = arith.constant 0 : i32
    return %arg1, %arg0 : i32, i32
  }
}

</mosaic_0001>

<llo_original>
// kernel: positional_encoding.1
$region0: #{positional_encoding.1}
  #allocation0 [shape = 'u32[]', space=smem, size = 0x4, offset = 0x4, fixed_abs, tag = 'smem constant byte address 0x4 - core index']
  #allocation1 [shape = 'u32[144,128]{1,0:T(1,128)}', space=vmem, size = 0x12000, scoped, tag = 'internal scratch']
  %s0 = inlined_call_operand.vmem [shape: f32[2,256], index: 0, kind: input, shape index: {}, may-alias: {0,2}]
  %s1 = inlined_call_operand.vmem [shape: f32[1,256], index: 1, kind: input, shape index: {}]
  %s2 = inlined_call_operand.vmem [shape: f32[2,256], index: 2, kind: output, shape index: {}, may-alias: {0,2}]
  %s3 = sld [smem:[#allocation0]]
  $region18: #{positional_encoding.1} parent=0
    _
  %s5 = ssub.s32 1, %s3
  %s6 = scalar_select 0, %s5, %s3
  // Predicated region
  $region2: #{positional_encoding.1} parent=0 // pred_check
    _
  $region3: #{positional_encoding.1} parent=0 // pred_check_branch
    %8 = sbr.rel (0) target = $region5
  $region4: #{positional_encoding.1} parent=0 // pred_region
    _
  $region5: #{positional_encoding.1} parent=0 // pred_fallthru
    _
  // Predicated region
  $region6: #{positional_encoding.1} parent=0 // pred_check
    _
  $region7: #{positional_encoding.1} parent=0 // pred_check_branch
    %10 = sbr.rel (0) target = $region9
  $region8: #{positional_encoding.1} parent=0 // pred_region
    _
  $region9: #{positional_encoding.1} parent=0 // pred_fallthru
    _
  %v11 = vld [vmem:[%s0] sm:$0xf]
  %v12 = vld [vmem:[%s1] sm:$0x3]
  %v14 = vlaneseq
  %v15 = vshrl.u32 %v14, 7
  %v16 = vsub.s32 0, %v15
  %v17 = vrot.slane %v12, %v16
  %v18 = vlaneseq
  %v19 = vshrl.u32 %v18, 7
  %v20 = vsub.s32 1, %v19
  %v21 = vrot.slane %v12, %v20
  %v22 = vcombine.low %v17, %v21
  %v24 = vunpack.c.l.s4 1983009808
  %v25 = vunpack.c.0.s8 %v24
  %v26 = vlaneseq
  %v27 = vshrl.u32 %v26, 7
  %v28 = vsub.s32 %v25, %v27
  %v29 = vrot.slane %v22, %v28
  %v31 = vadd.f32 %v11, %v29
  %32 = vst [vmem:[%s2] sm:$0xf] %v31
  // Predicated region
  $region10: #{positional_encoding.1} parent=0 // pred_check
    _
  $region11: #{positional_encoding.1} parent=0 // pred_check_branch
    %34 = sbr.rel (0) target = $region13
  $region12: #{positional_encoding.1} parent=0 // pred_region
    _
  $region13: #{positional_encoding.1} parent=0 // pred_fallthru
    _
  // Predicated region
  $region14: #{positional_encoding.1} parent=0 // pred_check
    _
  $region15: #{positional_encoding.1} parent=0 // pred_check_branch
    %36 = sbr.rel (0) target = $region17
  $region16: #{positional_encoding.1} parent=0 // pred_region
    _
  $region17: #{positional_encoding.1} parent=0 // pred_fallthru
    _

</llo_original>
